<compile_context>
chip_gen: v6e
topology: v6e:2x2x1
jax: 0.10.0
libtpu: 0.0.40
codegen_flags: <defaults>
</compile_context>

<pallas_src>
import functools

import jax
import jax.numpy as jnp
from jax.experimental import pallas as pl
from jax.experimental.pallas import tpu as pltpu


def _round_up(n, m):
    return (n + m - 1) // m * m


def _gelu(x):
    # tanh-approximate GELU: lowers to EUP (own VLIW slot), frees the VALU.
    # (~1e-3 deviation from PyTorch's exact erf GELU.)
    return jax.nn.gelu(x, approximate=True)


def vae_kernel(latent_dim,
               x_ref, eps_ref,
               w1_ref, b1_ref, w2_ref, b2_ref, w3_ref, b3_ref,
               wmv_ref, bmv_ref,
               w4_ref, b4_ref, w5_ref, b5_ref, w6_ref, b6_ref,
               mulv_ref, xhat_ref):
    def linear(h, w_ref, b_ref):
        # bf16 x bf16 on the MXU, f32 accumulation; bias add in f32.
        return jnp.dot(h.astype(jnp.bfloat16), w_ref[...],
                       preferred_element_type=jnp.float32) + b_ref[...]

    x = x_ref[...]

    # ---- encode ----
    h = _gelu(linear(x, w1_ref, b1_ref))      # fc1 + gelu  (dropout = id)
    h = _gelu(linear(h, w2_ref, b2_ref))      # fc2 + gelu  (dropout = id)
    h = _gelu(linear(h, w3_ref, b3_ref))      # fc3 + gelu

    # fused fc_mu | fc_logvar head, output lane-padded to 128.
    mulv = linear(h, wmv_ref, bmv_ref)        # (TILE_B, LAT_PAD)
    mulv_ref[...] = mulv.astype(mulv_ref.dtype)   # lane-dense unmasked store

    mu = mulv[:, :latent_dim]
    logvar = mulv[:, latent_dim:2 * latent_dim]

    # ---- reparameterize: z = mu + exp(logvar/2) * eps ----
    std = jnp.exp(logvar * 0.5)
    z = mu + std * eps_ref[...]

    # ---- decode ----
    d = _gelu(linear(z, w4_ref, b4_ref))      # fc4 + gelu  (dropout = id)
    d = _gelu(linear(d, w5_ref, b5_ref))      # fc5 + gelu
    xhat = linear(d, w6_ref, b6_ref)          # fc6, output lane-padded to 128
    xhat_ref[...] = xhat.astype(xhat_ref.dtype)   # lane-dense unmasked store


def pack_params(params, latent_dim, output_dim):
    """Model params (f32, (in,out)) -> kernel params: bf16 weights, fused and
    lane-padded mu|logvar and fc6 heads, f32 biases."""
    lat_pad = _round_up(2 * latent_dim, 128)
    out_pad = _round_up(output_dim, 128)

    p = {}
    for name in ("1", "2", "3", "4", "5"):
        p[f"w{name}"] = params[f"w{name}"].astype(jnp.bfloat16)
        p[f"b{name}"] = params[f"b{name}"]

    # fused fc_mu | fc_logvar, zero-padded to lat_pad output lanes
    wmv = jnp.concatenate([params["wmu"], params["wlv"]], axis=1)
    bmv = jnp.concatenate([params["bmu"], params["blv"]], axis=1)
    p["wmv"] = jnp.pad(wmv, ((0, 0), (0, lat_pad - 2 * latent_dim))).astype(jnp.bfloat16)
    p["bmv"] = jnp.pad(bmv, ((0, 0), (0, lat_pad - 2 * latent_dim)))

    # fc6, zero-padded to out_pad output lanes
    p["w6"] = jnp.pad(params["w6"], ((0, 0), (0, out_pad - output_dim))).astype(jnp.bfloat16)
    p["b6"] = jnp.pad(params["b6"], ((0, 0), (0, out_pad - output_dim)))
    return p


def vae_forward(x, eps, packed, *, latent_dim, output_dim):
    B, input_dim = x.shape
    lat_pad = packed["wmv"].shape[1]
    out_pad = packed["w6"].shape[1]

    # Batch tiling: tile must be a multiple of 8 sublanes (f32). Weights are
    # tiny and stay VMEM-resident across all grid steps.
    b_pad8 = _round_up(max(B, 8), 8)
    tile_b = min(256, b_pad8)
    b_pad = _round_up(b_pad8, tile_b)
    if b_pad != B:
        x = jnp.pad(x, ((0, b_pad - B), (0, 0)))
        eps = jnp.pad(eps, ((0, b_pad - B), (0, 0)))
    grid = (b_pad // tile_b,)

    weight_order = ("w1", "b1", "w2", "b2", "w3", "b3", "wmv", "bmv",
                    "w4", "b4", "w5", "b5", "w6", "b6")
    weights = tuple(packed[k] for k in weight_order)

    def row_spec(feat):
        return pl.BlockSpec((tile_b, feat), lambda i: (i, 0))

    def whole_spec(arr):
        return pl.BlockSpec(arr.shape, lambda i: (0, 0))   # VMEM-resident

    in_specs = ([row_spec(input_dim), row_spec(latent_dim)]
                + [whole_spec(w) for w in weights])
    out_specs = [row_spec(lat_pad), row_spec(out_pad)]
    out_shape = (jax.ShapeDtypeStruct((b_pad, lat_pad), jnp.float32),
                 jax.ShapeDtypeStruct((b_pad, out_pad), jnp.float32))

    # Advisory cost estimate for XLA's scheduler.
    flops = sum(2 * b_pad * packed[k].shape[0] * packed[k].shape[1]
                for k in ("w1", "w2", "w3", "wmv", "w4", "w5", "w6"))
    transcendentals = b_pad * (packed["w1"].shape[1] + packed["w2"].shape[1]
                               + packed["w3"].shape[1] + packed["w4"].shape[1]
                               + packed["w5"].shape[1] + latent_dim)
    bytes_accessed = ((x.size + eps.size) * 4
                      + sum(w.size * w.dtype.itemsize for w in weights)
                      + (b_pad * lat_pad + b_pad * out_pad) * 4)

    mulv, xhat = pl.pallas_call(
        functools.partial(vae_kernel, latent_dim),
        out_shape=out_shape,
        grid_spec=pltpu.PrefetchScalarGridSpec(
            num_scalar_prefetch=0,
            grid=grid,
            in_specs=in_specs,
            out_specs=out_specs),
        compiler_params=pltpu.CompilerParams(
            dimension_semantics=("parallel",)),
        cost_estimate=pl.CostEstimate(flops=flops,
                                      transcendentals=transcendentals,
                                      bytes_accessed=bytes_accessed),
    )(x, eps, *weights)

    mu = mulv[:B, :latent_dim]
    logvar = mulv[:B, latent_dim:2 * latent_dim]
    x_hat = xhat[:B, :output_dim]
    return x_hat, mu, logvar


def init_params(key, input_dim, hidden_dim, hidden_dim2, latent_dim, output_dim):
    """Deterministic synthetic parameters. Weights stored as (in, out), f32."""
    dims = {
        "1": (input_dim, hidden_dim),
        "2": (hidden_dim, hidden_dim),
        "3": (hidden_dim, hidden_dim2),
        "mu": (hidden_dim2, latent_dim),
        "lv": (hidden_dim2, latent_dim),
        "4": (latent_dim, hidden_dim2),
        "5": (hidden_dim2, hidden_dim),
        "6": (hidden_dim, output_dim),
    }
    params = {}
    for name, (din, dout) in dims.items():
        key, kw, kb = jax.random.split(key, 3)
        bound = 1.0 / jnp.sqrt(din)
        params[f"w{name}"] = jax.random.uniform(
            kw, (din, dout), jnp.float32, -bound, bound)
        params[f"b{name}"] = jax.random.uniform(
            kb, (1, dout), jnp.float32, -bound, bound)
    return params


def vae_reference(x, eps, params):
    """Plain-JAX reference mirroring the kernel's compute path
    (bf16 matmul operands, f32 accumulation, tanh GELU)."""
    def lin(h, w, b):
        return jnp.dot(h.astype(jnp.bfloat16), w.astype(jnp.bfloat16),
                       preferred_element_type=jnp.float32) + b
    h = _gelu(lin(x, params["w1"], params["b1"]))
    h = _gelu(lin(h, params["w2"], params["b2"]))
    h = _gelu(lin(h, params["w3"], params["b3"]))
    mu = lin(h, params["wmu"], params["bmu"])
    logvar = lin(h, params["wlv"], params["blv"])
    z = mu + jnp.exp(logvar * 0.5) * eps
    d = _gelu(lin(z, params["w4"], params["b4"]))
    d = _gelu(lin(d, params["w5"], params["b5"]))
    xhat = lin(d, params["w6"], params["b6"])
    return xhat, mu, logvar


if __name__ == "__main__":
    # small config consistent with the module's __init__
    B = 8
    input_dim, hidden_dim, hidden_dim2 = 32, 64, 64
    latent_dim, output_dim = 16, 32

    key = jax.random.PRNGKey(0)
    key, kx, keps, kp = jax.random.split(key, 4)

    x = jax.random.normal(kx, (B, input_dim), jnp.float32)
    eps = jax.random.normal(keps, (B, latent_dim), jnp.float32)  # reparam noise
    params = init_params(kp, input_dim, hidden_dim, hidden_dim2,
                         latent_dim, output_dim)
    packed = pack_params(params, latent_dim, output_dim)

    x_hat, mu, logvar = jax.block_until_ready(
        vae_forward(x, eps, packed, latent_dim=latent_dim, output_dim=output_dim))

    x_hat_ref, mu_ref, logvar_ref = vae_reference(x, eps, params)
    assert jnp.allclose(mu, mu_ref, atol=2e-3, rtol=2e-3)
    assert jnp.allclose(logvar, logvar_ref, atol=2e-3, rtol=2e-3)
    assert jnp.allclose(x_hat, x_hat_ref, atol=2e-3, rtol=2e-3)

    print("KERNEL_OK")
</pallas_src>

<mosaic_0001>
module attributes {stable_mosaic.version = 11 : i64} {
  func.func @vae_kernel(%arg0: i32, %arg1: memref<8x32xf32, #tpu.memory_space<vmem>>, %arg2: memref<8x16xf32, #tpu.memory_space<vmem>>, %arg3: memref<32x64xbf16, #tpu.memory_space<vmem>>, %arg4: memref<1x64xf32, #tpu.memory_space<vmem>>, %arg5: memref<64x64xbf16, #tpu.memory_space<vmem>>, %arg6: memref<1x64xf32, #tpu.memory_space<vmem>>, %arg7: memref<64x64xbf16, #tpu.memory_space<vmem>>, %arg8: memref<1x64xf32, #tpu.memory_space<vmem>>, %arg9: memref<64x128xbf16, #tpu.memory_space<vmem>>, %arg10: memref<1x128xf32, #tpu.memory_space<vmem>>, %arg11: memref<16x64xbf16, #tpu.memory_space<vmem>>, %arg12: memref<1x64xf32, #tpu.memory_space<vmem>>, %arg13: memref<64x64xbf16, #tpu.memory_space<vmem>>, %arg14: memref<1x64xf32, #tpu.memory_space<vmem>>, %arg15: memref<64x128xbf16, #tpu.memory_space<vmem>>, %arg16: memref<1x128xf32, #tpu.memory_space<vmem>>, %arg17: memref<8x128xf32, #tpu.memory_space<vmem>>, %arg18: memref<8x128xf32, #tpu.memory_space<vmem>>) attributes {dimension_semantics = [#tpu.dimension_semantics<parallel>], iteration_bounds = array<i64: 1>, scalar_prefetch = 0 : i64, scratch_operands = 0 : i64, tpu.core_type = #tpu.core_type<tc>, window_params = [{transform_indices = @transform_0, window_bounds = array<i64: 8, 32>}, {transform_indices = @transform_1, window_bounds = array<i64: 8, 16>}, {pipeline_mode = #tpu.pipeline_mode<synchronous>, transform_indices = @transform_2, window_bounds = array<i64: 32, 64>}, {pipeline_mode = #tpu.pipeline_mode<synchronous>, transform_indices = @transform_3, window_bounds = array<i64: 1, 64>}, {pipeline_mode = #tpu.pipeline_mode<synchronous>, transform_indices = @transform_4, window_bounds = array<i64: 64, 64>}, {pipeline_mode = #tpu.pipeline_mode<synchronous>, transform_indices = @transform_5, window_bounds = array<i64: 1, 64>}, {pipeline_mode = #tpu.pipeline_mode<synchronous>, transform_indices = @transform_6, window_bounds = array<i64: 64, 64>}, {pipeline_mode = #tpu.pipeline_mode<synchronous>, transform_indices = @transform_7, window_bounds = array<i64: 1, 64>}, {pipeline_mode = #tpu.pipeline_mode<synchronous>, transform_indices = @transform_8, window_bounds = array<i64: 64, 128>}, {pipeline_mode = #tpu.pipeline_mode<synchronous>, transform_indices = @transform_9, window_bounds = array<i64: 1, 128>}, {pipeline_mode = #tpu.pipeline_mode<synchronous>, transform_indices = @transform_10, window_bounds = array<i64: 16, 64>}, {pipeline_mode = #tpu.pipeline_mode<synchronous>, transform_indices = @transform_11, window_bounds = array<i64: 1, 64>}, {pipeline_mode = #tpu.pipeline_mode<synchronous>, transform_indices = @transform_12, window_bounds = array<i64: 64, 64>}, {pipeline_mode = #tpu.pipeline_mode<synchronous>, transform_indices = @transform_13, window_bounds = array<i64: 1, 64>}, {pipeline_mode = #tpu.pipeline_mode<synchronous>, transform_indices = @transform_14, window_bounds = array<i64: 64, 128>}, {pipeline_mode = #tpu.pipeline_mode<synchronous>, transform_indices = @transform_15, window_bounds = array<i64: 1, 128>}, {transform_indices = @transform_16, window_bounds = array<i64: 8, 128>}, {transform_indices = @transform_17, window_bounds = array<i64: 8, 128>}]} {
    %c0 = arith.constant 0 : index
    %c0_0 = arith.constant 0 : index
    %0 = vector.load %arg1[%c0, %c0_0] : memref<8x32xf32, #tpu.memory_space<vmem>>, vector<8x32xf32>
    %1 = arith.truncf %0 : vector<8x32xf32> to vector<8x32xbf16>
    %c0_1 = arith.constant 0 : index
    %c0_2 = arith.constant 0 : index
    %2 = vector.load %arg3[%c0_1, %c0_2] : memref<32x64xbf16, #tpu.memory_space<vmem>>, vector<32x64xbf16>
    %cst = arith.constant dense<0.000000e+00> : vector<8x64xf32>
    %3 = tpu.matmul %1, %2, %cst {dimension_numbers = #tpu.dot_dimension_numbers<[1], [0], [0], [1], [0, 0, 1, 1], [], []>} : vector<8x32xbf16>, vector<32x64xbf16>, vector<8x64xf32> -> vector<8x64xf32>
    %c0_3 = arith.constant 0 : index
    %c0_4 = arith.constant 0 : index
    %4 = vector.load %arg4[%c0_3, %c0_4] : memref<1x64xf32, #tpu.memory_space<vmem>>, vector<1x64xf32>
    %5 = vector.broadcast %4 : vector<1x64xf32> to vector<8x64xf32>
    %6 = arith.addf %3, %5 : vector<8x64xf32>
    %7 = arith.mulf %6, %6 : vector<8x64xf32>
    %8 = arith.mulf %6, %7 : vector<8x64xf32>
    %cst_5 = arith.constant 4.471500e-02 : f32
    %9 = vector.broadcast %cst_5 : f32 to vector<8x64xf32>
    %10 = arith.mulf %9, %8 : vector<8x64xf32>
    %11 = arith.addf %6, %10 : vector<8x64xf32>
    %cst_6 = arith.constant 0.797884583 : f32
    %12 = vector.broadcast %cst_6 : f32 to vector<8x64xf32>
    %13 = arith.mulf %12, %11 : vector<8x64xf32>
    %14 = math.tanh %13 : vector<8x64xf32>
    %cst_7 = arith.constant 1.000000e+00 : f32
    %15 = vector.broadcast %cst_7 : f32 to vector<8x64xf32>
    %16 = arith.addf %15, %14 : vector<8x64xf32>
    %cst_8 = arith.constant 5.000000e-01 : f32
    %17 = vector.broadcast %cst_8 : f32 to vector<8x64xf32>
    %18 = arith.mulf %17, %16 : vector<8x64xf32>
    %19 = arith.mulf %6, %18 : vector<8x64xf32>
    %20 = arith.truncf %19 : vector<8x64xf32> to vector<8x64xbf16>
    %c0_9 = arith.constant 0 : index
    %c0_10 = arith.constant 0 : index
    %21 = vector.load %arg5[%c0_9, %c0_10] : memref<64x64xbf16, #tpu.memory_space<vmem>>, vector<64x64xbf16>
    %cst_11 = arith.constant dense<0.000000e+00> : vector<8x64xf32>
    %22 = tpu.matmul %20, %21, %cst_11 {dimension_numbers = #tpu.dot_dimension_numbers<[1], [0], [0], [1], [0, 0, 1, 1], [], []>} : vector<8x64xbf16>, vector<64x64xbf16>, vector<8x64xf32> -> vector<8x64xf32>
    %c0_12 = arith.constant 0 : index
    %c0_13 = arith.constant 0 : index
    %23 = vector.load %arg6[%c0_12, %c0_13] : memref<1x64xf32, #tpu.memory_space<vmem>>, vector<1x64xf32>
    %24 = vector.broadcast %23 : vector<1x64xf32> to vector<8x64xf32>
    %25 = arith.addf %22, %24 : vector<8x64xf32>
    %26 = arith.mulf %25, %25 : vector<8x64xf32>
    %27 = arith.mulf %25, %26 : vector<8x64xf32>
    %cst_14 = arith.constant 4.471500e-02 : f32
    %28 = vector.broadcast %cst_14 : f32 to vector<8x64xf32>
    %29 = arith.mulf %28, %27 : vector<8x64xf32>
    %30 = arith.addf %25, %29 : vector<8x64xf32>
    %cst_15 = arith.constant 0.797884583 : f32
    %31 = vector.broadcast %cst_15 : f32 to vector<8x64xf32>
    %32 = arith.mulf %31, %30 : vector<8x64xf32>
    %33 = math.tanh %32 : vector<8x64xf32>
    %cst_16 = arith.constant 1.000000e+00 : f32
    %34 = vector.broadcast %cst_16 : f32 to vector<8x64xf32>
    %35 = arith.addf %34, %33 : vector<8x64xf32>
    %cst_17 = arith.constant 5.000000e-01 : f32
    %36 = vector.broadcast %cst_17 : f32 to vector<8x64xf32>
    %37 = arith.mulf %36, %35 : vector<8x64xf32>
    %38 = arith.mulf %25, %37 : vector<8x64xf32>
    %39 = arith.truncf %38 : vector<8x64xf32> to vector<8x64xbf16>
    %c0_18 = arith.constant 0 : index
    %c0_19 = arith.constant 0 : index
    %40 = vector.load %arg7[%c0_18, %c0_19] : memref<64x64xbf16, #tpu.memory_space<vmem>>, vector<64x64xbf16>
    %cst_20 = arith.constant dense<0.000000e+00> : vector<8x64xf32>
    %41 = tpu.matmul %39, %40, %cst_20 {dimension_numbers = #tpu.dot_dimension_numbers<[1], [0], [0], [1], [0, 0, 1, 1], [], []>} : vector<8x64xbf16>, vector<64x64xbf16>, vector<8x64xf32> -> vector<8x64xf32>
    %c0_21 = arith.constant 0 : index
    %c0_22 = arith.constant 0 : index
    %42 = vector.load %arg8[%c0_21, %c0_22] : memref<1x64xf32, #tpu.memory_space<vmem>>, vector<1x64xf32>
    %43 = vector.broadcast %42 : vector<1x64xf32> to vector<8x64xf32>
    %44 = arith.addf %41, %43 : vector<8x64xf32>
    %45 = arith.mulf %44, %44 : vector<8x64xf32>
    %46 = arith.mulf %44, %45 : vector<8x64xf32>
    %cst_23 = arith.constant 4.471500e-02 : f32
    %47 = vector.broadcast %cst_23 : f32 to vector<8x64xf32>
    %48 = arith.mulf %47, %46 : vector<8x64xf32>
    %49 = arith.addf %44, %48 : vector<8x64xf32>
    %cst_24 = arith.constant 0.797884583 : f32
    %50 = vector.broadcast %cst_24 : f32 to vector<8x64xf32>
    %51 = arith.mulf %50, %49 : vector<8x64xf32>
    %52 = math.tanh %51 : vector<8x64xf32>
    %cst_25 = arith.constant 1.000000e+00 : f32
    %53 = vector.broadcast %cst_25 : f32 to vector<8x64xf32>
    %54 = arith.addf %53, %52 : vector<8x64xf32>
    %cst_26 = arith.constant 5.000000e-01 : f32
    %55 = vector.broadcast %cst_26 : f32 to vector<8x64xf32>
    %56 = arith.mulf %55, %54 : vector<8x64xf32>
    %57 = arith.mulf %44, %56 : vector<8x64xf32>
    %58 = arith.truncf %57 : vector<8x64xf32> to vector<8x64xbf16>
    %c0_27 = arith.constant 0 : index
    %c0_28 = arith.constant 0 : index
    %59 = vector.load %arg9[%c0_27, %c0_28] : memref<64x128xbf16, #tpu.memory_space<vmem>>, vector<64x128xbf16>
    %cst_29 = arith.constant dense<0.000000e+00> : vector<8x128xf32>
    %60 = tpu.matmul %58, %59, %cst_29 {dimension_numbers = #tpu.dot_dimension_numbers<[1], [0], [0], [1], [0, 0, 1, 1], [], []>} : vector<8x64xbf16>, vector<64x128xbf16>, vector<8x128xf32> -> vector<8x128xf32>
    %c0_30 = arith.constant 0 : index
    %c0_31 = arith.constant 0 : index
    %61 = vector.load %arg10[%c0_30, %c0_31] : memref<1x128xf32, #tpu.memory_space<vmem>>, vector<1x128xf32>
    %62 = vector.broadcast %61 : vector<1x128xf32> to vector<8x128xf32>
    %63 = arith.addf %60, %62 : vector<8x128xf32>
    %c0_32 = arith.constant 0 : index
    %c0_33 = arith.constant 0 : index
    %64 = vector.load %arg17[%c0_32, %c0_33] : memref<8x128xf32, #tpu.memory_space<vmem>>, vector<8x128xf32>
    tpu.vector_store %arg17[%c0_32, %c0_33], %63 {strides = array<i32>} : memref<8x128xf32, #tpu.memory_space<vmem>>, vector<8x128xf32>,
    %65 = vector.extract_strided_slice %63 {offsets = [0, 0], sizes = [8, 16], strides = [1, 1]} : vector<8x128xf32> to vector<8x16xf32>
    %66 = vector.extract_strided_slice %63 {offsets = [0, 16], sizes = [8, 16], strides = [1, 1]} : vector<8x128xf32> to vector<8x16xf32>
    %cst_34 = arith.constant 5.000000e-01 : f32
    %67 = vector.broadcast %cst_34 : f32 to vector<8x16xf32>
    %68 = arith.mulf %66, %67 : vector<8x16xf32>
    %69 = math.exp %68 : vector<8x16xf32>
    %c0_35 = arith.constant 0 : index
    %c0_36 = arith.constant 0 : index
    %70 = vector.load %arg2[%c0_35, %c0_36] : memref<8x16xf32, #tpu.memory_space<vmem>>, vector<8x16xf32>
    %71 = arith.mulf %69, %70 : vector<8x16xf32>
    %72 = arith.addf %65, %71 : vector<8x16xf32>
    %73 = arith.truncf %72 : vector<8x16xf32> to vector<8x16xbf16>
    %c0_37 = arith.constant 0 : index
    %c0_38 = arith.constant 0 : index
    %74 = vector.load %arg11[%c0_37, %c0_38] : memref<16x64xbf16, #tpu.memory_space<vmem>>, vector<16x64xbf16>
    %cst_39 = arith.constant dense<0.000000e+00> : vector<8x64xf32>
    %75 = tpu.matmul %73, %74, %cst_39 {dimension_numbers = #tpu.dot_dimension_numbers<[1], [0], [0], [1], [0, 0, 1, 1], [], []>} : vector<8x16xbf16>, vector<16x64xbf16>, vector<8x64xf32> -> vector<8x64xf32>
    %c0_40 = arith.constant 0 : index
    %c0_41 = arith.constant 0 : index
    %76 = vector.load %arg12[%c0_40, %c0_41] : memref<1x64xf32, #tpu.memory_space<vmem>>, vector<1x64xf32>
    %77 = vector.broadcast %76 : vector<1x64xf32> to vector<8x64xf32>
    %78 = arith.addf %75, %77 : vector<8x64xf32>
    %79 = arith.mulf %78, %78 : vector<8x64xf32>
    %80 = arith.mulf %78, %79 : vector<8x64xf32>
    %cst_42 = arith.constant 4.471500e-02 : f32
    %81 = vector.broadcast %cst_42 : f32 to vector<8x64xf32>
    %82 = arith.mulf %81, %80 : vector<8x64xf32>
    %83 = arith.addf %78, %82 : vector<8x64xf32>
    %cst_43 = arith.constant 0.797884583 : f32
    %84 = vector.broadcast %cst_43 : f32 to vector<8x64xf32>
    %85 = arith.mulf %84, %83 : vector<8x64xf32>
    %86 = math.tanh %85 : vector<8x64xf32>
    %cst_44 = arith.constant 1.000000e+00 : f32
    %87 = vector.broadcast %cst_44 : f32 to vector<8x64xf32>
    %88 = arith.addf %87, %86 : vector<8x64xf32>
    %cst_45 = arith.constant 5.000000e-01 : f32
    %89 = vector.broadcast %cst_45 : f32 to vector<8x64xf32>
    %90 = arith.mulf %89, %88 : vector<8x64xf32>
    %91 = arith.mulf %78, %90 : vector<8x64xf32>
    %92 = arith.truncf %91 : vector<8x64xf32> to vector<8x64xbf16>
    %c0_46 = arith.constant 0 : index
    %c0_47 = arith.constant 0 : index
    %93 = vector.load %arg13[%c0_46, %c0_47] : memref<64x64xbf16, #tpu.memory_space<vmem>>, vector<64x64xbf16>
    %cst_48 = arith.constant dense<0.000000e+00> : vector<8x64xf32>
    %94 = tpu.matmul %92, %93, %cst_48 {dimension_numbers = #tpu.dot_dimension_numbers<[1], [0], [0], [1], [0, 0, 1, 1], [], []>} : vector<8x64xbf16>, vector<64x64xbf16>, vector<8x64xf32> -> vector<8x64xf32>
    %c0_49 = arith.constant 0 : index
    %c0_50 = arith.constant 0 : index
    %95 = vector.load %arg14[%c0_49, %c0_50] : memref<1x64xf32, #tpu.memory_space<vmem>>, vector<1x64xf32>
    %96 = vector.broadcast %95 : vector<1x64xf32> to vector<8x64xf32>
    %97 = arith.addf %94, %96 : vector<8x64xf32>
    %98 = arith.mulf %97, %97 : vector<8x64xf32>
    %99 = arith.mulf %97, %98 : vector<8x64xf32>
    %cst_51 = arith.constant 4.471500e-02 : f32
    %100 = vector.broadcast %cst_51 : f32 to vector<8x64xf32>
    %101 = arith.mulf %100, %99 : vector<8x64xf32>
    %102 = arith.addf %97, %101 : vector<8x64xf32>
    %cst_52 = arith.constant 0.797884583 : f32
    %103 = vector.broadcast %cst_52 : f32 to vector<8x64xf32>
    %104 = arith.mulf %103, %102 : vector<8x64xf32>
    %105 = math.tanh %104 : vector<8x64xf32>
    %cst_53 = arith.constant 1.000000e+00 : f32
    %106 = vector.broadcast %cst_53 : f32 to vector<8x64xf32>
    %107 = arith.addf %106, %105 : vector<8x64xf32>
    %cst_54 = arith.constant 5.000000e-01 : f32
    %108 = vector.broadcast %cst_54 : f32 to vector<8x64xf32>
    %109 = arith.mulf %108, %107 : vector<8x64xf32>
    %110 = arith.mulf %97, %109 : vector<8x64xf32>
    %111 = arith.truncf %110 : vector<8x64xf32> to vector<8x64xbf16>
    %c0_55 = arith.constant 0 : index
    %c0_56 = arith.constant 0 : index
    %112 = vector.load %arg15[%c0_55, %c0_56] : memref<64x128xbf16, #tpu.memory_space<vmem>>, vector<64x128xbf16>
    %cst_57 = arith.constant dense<0.000000e+00> : vector<8x128xf32>
    %113 = tpu.matmul %111, %112, %cst_57 {dimension_numbers = #tpu.dot_dimension_numbers<[1], [0], [0], [1], [0, 0, 1, 1], [], []>} : vector<8x64xbf16>, vector<64x128xbf16>, vector<8x128xf32> -> vector<8x128xf32>
    %c0_58 = arith.constant 0 : index
    %c0_59 = arith.constant 0 : index
    %114 = vector.load %arg16[%c0_58, %c0_59] : memref<1x128xf32, #tpu.memory_space<vmem>>, vector<1x128xf32>
    %115 = vector.broadcast %114 : vector<1x128xf32> to vector<8x128xf32>
    %116 = arith.addf %113, %115 : vector<8x128xf32>
    %c0_60 = arith.constant 0 : index
    %c0_61 = arith.constant 0 : index
    %117 = vector.load %arg18[%c0_60, %c0_61] : memref<8x128xf32, #tpu.memory_space<vmem>>, vector<8x128xf32>
    tpu.vector_store %arg18[%c0_60, %c0_61], %116 {strides = array<i32>} : memref<8x128xf32, #tpu.memory_space<vmem>>, vector<8x128xf32>,
    return
  }
  func.func @transform_0(%arg0: i32) -> (i32, i32) {
    %c0_i32 = arith.constant 0 : i32
    %c0_i32_0 = arith.constant 0 : i32
    return %arg0, %c0_i32 : i32, i32
  }
  func.func @transform_1(%arg0: i32) -> (i32, i32) {
    %c0_i32 = arith.constant 0 : i32
    %c0_i32_0 = arith.constant 0 : i32
    return %arg0, %c0_i32 : i32, i32
  }
  func.func @transform_2(%arg0: i32) -> (i32, i32) {
    %c0_i32 = arith.constant 0 : i32
    %c0_i32_0 = arith.constant 0 : i32
    %c0_i32_1 = arith.constant 0 : i32
    return %c0_i32, %c0_i32_0 : i32, i32
  }
  func.func @transform_3(%arg0: i32) -> (i32, i32) {
    %c0_i32 = arith.constant 0 : i32
    %c0_i32_0 = arith.constant 0 : i32
    %c0_i32_1 = arith.constant 0 : i32
    return %c0_i32, %c0_i32_0 : i32, i32
  }
  func.func @transform_4(%arg0: i32) -> (i32, i32) {
    %c0_i32 = arith.constant 0 : i32
    %c0_i32_0 = arith.constant 0 : i32
    %c0_i32_1 = arith.constant 0 : i32
    return %c0_i32, %c0_i32_0 : i32, i32
  }
  func.func @transform_5(%arg0: i32) -> (i32, i32) {
    %c0_i32 = arith.constant 0 : i32
    %c0_i32_0 = arith.constant 0 : i32
    %c0_i32_1 = arith.constant 0 : i32
    return %c0_i32, %c0_i32_0 : i32, i32
  }
  func.func @transform_6(%arg0: i32) -> (i32, i32) {
    %c0_i32 = arith.constant 0 : i32
    %c0_i32_0 = arith.constant 0 : i32
    %c0_i32_1 = arith.constant 0 : i32
    return %c0_i32, %c0_i32_0 : i32, i32
  }
  func.func @transform_7(%arg0: i32) -> (i32, i32) {
    %c0_i32 = arith.constant 0 : i32
    %c0_i32_0 = arith.constant 0 : i32
    %c0_i32_1 = arith.constant 0 : i32
    return %c0_i32, %c0_i32_0 : i32, i32
  }
  func.func @transform_8(%arg0: i32) -> (i32, i32) {
    %c0_i32 = arith.constant 0 : i32
    %c0_i32_0 = arith.constant 0 : i32
    %c0_i32_1 = arith.constant 0 : i32
    return %c0_i32, %c0_i32_0 : i32, i32
  }
  func.func @transform_9(%arg0: i32) -> (i32, i32) {
    %c0_i32 = arith.constant 0 : i32
    %c0_i32_0 = arith.constant 0 : i32
    %c0_i32_1 = arith.constant 0 : i32
    return %c0_i32, %c0_i32_0 : i32, i32
  }
  func.func @transform_10(%arg0: i32) -> (i32, i32) {
    %c0_i32 = arith.constant 0 : i32
    %c0_i32_0 = arith.constant 0 : i32
    %c0_i32_1 = arith.constant 0 : i32
    return %c0_i32, %c0_i32_0 : i32, i32
  }
  func.func @transform_11(%arg0: i32) -> (i32, i32) {
    %c0_i32 = arith.constant 0 : i32
    %c0_i32_0 = arith.constant 0 : i32
    %c0_i32_1 = arith.constant 0 : i32
    return %c0_i32, %c0_i32_0 : i32, i32
  }
  func.func @transform_12(%arg0: i32) -> (i32, i32) {
    %c0_i32 = arith.constant 0 : i32
    %c0_i32_0 = arith.constant 0 : i32
    %c0_i32_1 = arith.constant 0 : i32
    return %c0_i32, %c0_i32_0 : i32, i32
  }
  func.func @transform_13(%arg0: i32) -> (i32, i32) {
    %c0_i32 = arith.constant 0 : i32
    %c0_i32_0 = arith.constant 0 : i32
    %c0_i32_1 = arith.constant 0 : i32
    return %c0_i32, %c0_i32_0 : i32, i32
  }
  func.func @transform_14(%arg0: i32) -> (i32, i32) {
    %c0_i32 = arith.constant 0 : i32
    %c0_i32_0 = arith.constant 0 : i32
    %c0_i32_1 = arith.constant 0 : i32
    return %c0_i32, %c0_i32_0 : i32, i32
  }
  func.func @transform_15(%arg0: i32) -> (i32, i32) {
    %c0_i32 = arith.constant 0 : i32
    %c0_i32_0 = arith.constant 0 : i32
    %c0_i32_1 = arith.constant 0 : i32
    return %c0_i32, %c0_i32_0 : i32, i32
  }
  func.func @transform_16(%arg0: i32) -> (i32, i32) {
    %c0_i32 = arith.constant 0 : i32
    %c0_i32_0 = arith.constant 0 : i32
    return %arg0, %c0_i32 : i32, i32
  }
  func.func @transform_17(%arg0: i32) -> (i32, i32) {
    %c0_i32 = arith.constant 0 : i32
    %c0_i32_0 = arith.constant 0 : i32
    return %arg0, %c0_i32 : i32, i32
  }
}

</mosaic_0001>

<llo_original>
// kernel: tpu_custom_call.1
$region0: #{tpu_custom_call.1}
  #allocation0 [shape = 'u32[]', space=smem, size = 0x4, offset = 0x4, fixed_abs, tag = 'smem constant byte address 0x4 - core index']
  #allocation1 [shape = 'u32[144,128]{1,0:T(1,128)}', space=vmem, size = 0x12000, scoped, tag = 'internal scratch']
  %s0 = inlined_call_operand.hbm [shape: f32[8,32], index: 0, kind: input, shape index: {}]
  %s1 = inlined_call_operand.hbm [shape: f32[8,16], index: 1, kind: input, shape index: {}]
  %s2 = inlined_call_operand.hbm [shape: bf16[32,64], index: 2, kind: input, shape index: {}]
  %s3 = inlined_call_operand.vmem [shape: f32[1,64], index: 3, kind: input, shape index: {}]
  %s4 = inlined_call_operand.hbm [shape: bf16[64,64], index: 4, kind: input, shape index: {}]
  %s5 = inlined_call_operand.vmem [shape: f32[1,64], index: 5, kind: input, shape index: {}]
  %s6 = inlined_call_operand.hbm [shape: bf16[64,64], index: 6, kind: input, shape index: {}]
  %s7 = inlined_call_operand.vmem [shape: f32[1,64], index: 7, kind: input, shape index: {}]
  %s8 = inlined_call_operand.hbm [shape: bf16[64,128], index: 8, kind: input, shape index: {}]
  %s9 = inlined_call_operand.vmem [shape: f32[1,128], index: 9, kind: input, shape index: {}]
  %s10 = inlined_call_operand.vmem [shape: bf16[16,64], index: 10, kind: input, shape index: {}]
  %s11 = inlined_call_operand.vmem [shape: f32[1,64], index: 11, kind: input, shape index: {}]
  %s12 = inlined_call_operand.hbm [shape: bf16[64,64], index: 12, kind: input, shape index: {}]
  %s13 = inlined_call_operand.vmem [shape: f32[1,64], index: 13, kind: input, shape index: {}]
  %s14 = inlined_call_operand.hbm [shape: bf16[64,128], index: 14, kind: input, shape index: {}]
  %s15 = inlined_call_operand.vmem [shape: f32[1,128], index: 15, kind: input, shape index: {}]
  %s16 = inlined_call_operand.hbm [shape: f32[8,128], index: 16, kind: output, shape index: {0}]
  %s17 = inlined_call_operand.hbm [shape: f32[8,128], index: 17, kind: output, shape index: {1}]
  %18 = xla_tuple %s16, %s17
  %s19 = sld [smem:[#allocation0]]
  $region114: #{tpu_custom_call.1} parent=0
    _
  %s21 = ssub.s32 1, %s19
  %s22 = scalar_select 0, %s21, %s19
  $region1: #{tpu_custom_call.1} parent=0
    #allocation2 [shape = 'u8[4096]{0}', space=vmem, size = 0x1000, scoped, tag = 'input window, operand 0, single buffered']
    #allocation3 [shape = 's32[1]{0}', space=sflag, size = 0x4, scoped, tag = 'scoped memory for tpu_custom_call.1']
    #allocation4 [shape = 's32[1]{0}', space=sflag, size = 0x4, scoped, tag = 'scoped memory for tpu_custom_call.1']
    #allocation5 [shape = 'u8[4096]{0}', space=vmem, size = 0x1000, scoped, tag = 'input window, operand 1, single buffered']
    #allocation6 [shape = 's32[1]{0}', space=sflag, size = 0x4, scoped, tag = 'scoped memory for tpu_custom_call.1']
    #allocation7 [shape = 'u8[8192]{0}', space=vmem, size = 0x2000, scoped, tag = 'input window, operand 2, single buffered']
    #allocation8 [shape = 'u8[16384]{0}', space=vmem, size = 0x4000, scoped, tag = 'input window, operand 4, single buffered']
    #allocation9 [shape = 's32[1]{0}', space=sflag, size = 0x4, scoped, tag = 'scoped memory for tpu_custom_call.1']
    #allocation10 [shape = 'u8[16384]{0}', space=vmem, size = 0x4000, scoped, tag = 'input window, operand 6, single buffered']
    #allocation11 [shape = 'u8[16384]{0}', space=vmem, size = 0x4000, scoped, tag = 'input window, operand 8, single buffered']
    #allocation12 [shape = 's32[1]{0}', space=sflag, size = 0x4, scoped, tag = 'scoped memory for tpu_custom_call.1']
    #allocation13 [shape = 'u8[16384]{0}', space=vmem, size = 0x4000, scoped, tag = 'input window, operand 12, single buffered']
    #allocation14 [shape = 'u8[16384]{0}', space=vmem, size = 0x4000, scoped, tag = 'input window, operand 14, single buffered']
    #allocation15 [shape = 's32[1]{0}', space=sflag, size = 0x4, scoped, tag = 'scoped memory for tpu_custom_call.1']
    #allocation16 [shape = 'u8[4096]{0}', space=vmem, size = 0x1000, scoped, tag = 'output window, operand 0, single buffered']
    #allocation17 [shape = 'u8[4096]{0}', space=vmem, size = 0x1000, scoped, tag = 'output window, operand 1, single buffered']
    #allocation18 [shape = 's32[1]{0}', space=sflag, size = 0x4, scoped, tag = 'scoped memory for tpu_custom_call.1']
    %23 = vsyncpa [#allocation3], 0
    %24 = vsyncpa [#allocation6], 0
    %25 = vsyncpa [#allocation9], 0
    %26 = vsyncpa [#allocation12], 0
    %27 = vsyncpa [#allocation15], 0
    %28 = vsyncpa [#allocation4], 0
    %29 = vsyncpa [#allocation18], 0
    // Predicated region
    $region2: #{tpu_custom_call.1} parent=1 // pred_check
      _
    $region3: #{tpu_custom_call.1} parent=1 // pred_check_branch
      %31 = sbr.rel (0) target = $region5
    $region4: #{tpu_custom_call.1} parent=1 // pred_region
      %s33 = ssub.s32 128, 128
      %34 = vsyncadd [#allocation3], %s33
      %s36 = sshll.u32 [#allocation2], 4
      %s37 = int_to_ptr.vmem [resolvable:$true] %s36
      %39 = dma.hbm_to_vmem [thread:$0]  %s0, 128, %s37, [#allocation3]
    $region5: #{tpu_custom_call.1} parent=1 // pred_fallthru
      _
    // Predicated region
    $region6: #{tpu_custom_call.1} parent=1 // pred_check
      _
    $region7: #{tpu_custom_call.1} parent=1 // pred_check_branch
      %41 = sbr.rel (0) target = $region9
    $region8: #{tpu_custom_call.1} parent=1 // pred_region
      %s43 = ssub.s32 128, 128
      %44 = vsyncadd [#allocation6], %s43
      %s46 = sshll.u32 [#allocation5], 4
      %s47 = int_to_ptr.vmem [resolvable:$true] %s46
      %49 = dma.hbm_to_vmem [thread:$0]  %s1, 128, %s47, [#allocation6]
    $region9: #{tpu_custom_call.1} parent=1 // pred_fallthru
      _
    // Predicated region
    $region10: #{tpu_custom_call.1} parent=1 // pred_check
      _
    $region11: #{tpu_custom_call.1} parent=1 // pred_check_branch
      %51 = sbr.rel (0) target = $region13
    $region12: #{tpu_custom_call.1} parent=1 // pred_region
      %s53 = ssub.s32 256, 256
      %54 = vsyncadd [#allocation6], %s53
      %s55 = sshll.u32 [#allocation7], 4
      %s56 = int_to_ptr.vmem [resolvable:$true] %s55
      %61 = dma.hbm_to_vmem [thread:$0]  %s2, 256, %s56, [#allocation6], 64, 64, 4
    $region13: #{tpu_custom_call.1} parent=1 // pred_fallthru
      _
    // Predicated region
    $region14: #{tpu_custom_call.1} parent=1 // pred_check
      _
    $region15: #{tpu_custom_call.1} parent=1 // pred_check_branch
      %63 = sbr.rel (0) target = $region17
    $region16: #{tpu_custom_call.1} parent=1 // pred_region
      _
    $region17: #{tpu_custom_call.1} parent=1 // pred_fallthru
      _
    // Predicated region
    $region18: #{tpu_custom_call.1} parent=1 // pred_check
      _
    $region19: #{tpu_custom_call.1} parent=1 // pred_check_branch
      %65 = sbr.rel (0) target = $region21
    $region20: #{tpu_custom_call.1} parent=1 // pred_region
      %s67 = ssub.s32 512, 512
      %68 = vsyncadd [#allocation9], %s67
      %s69 = sshll.u32 [#allocation8], 4
      %s70 = int_to_ptr.vmem [resolvable:$true] %s69
      %75 = dma.hbm_to_vmem [thread:$0]  %s4, 512, %s70, [#allocation9], 64, 64, 4
    $region21: #{tpu_custom_call.1} parent=1 // pred_fallthru
      _
    // Predicated region
    $region22: #{tpu_custom_call.1} parent=1 // pred_check
      _
    $region23: #{tpu_custom_call.1} parent=1 // pred_check_branch
      %77 = sbr.rel (0) target = $region25
    $region24: #{tpu_custom_call.1} parent=1 // pred_region
      _
    $region25: #{tpu_custom_call.1} parent=1 // pred_fallthru
      _
    // Predicated region
    $region26: #{tpu_custom_call.1} parent=1 // pred_check
      _
    $region27: #{tpu_custom_call.1} parent=1 // pred_check_branch
      %79 = sbr.rel (0) target = $region29
    $region28: #{tpu_custom_call.1} parent=1 // pred_region
      %s81 = ssub.s32 512, 512
      %82 = vsyncadd [#allocation9], %s81
      %s83 = sshll.u32 [#allocation10], 4
      %s84 = int_to_ptr.vmem [resolvable:$true] %s83
      %89 = dma.hbm_to_vmem [thread:$0]  %s6, 512, %s84, [#allocation9], 64, 64, 4
    $region29: #{tpu_custom_call.1} parent=1 // pred_fallthru
      _
    // Predicated region
    $region30: #{tpu_custom_call.1} parent=1 // pred_check
      _
    $region31: #{tpu_custom_call.1} parent=1 // pred_check_branch
      %91 = sbr.rel (0) target = $region33
    $region32: #{tpu_custom_call.1} parent=1 // pred_region
      _
    $region33: #{tpu_custom_call.1} parent=1 // pred_fallthru
      _
    // Predicated region
    $region34: #{tpu_custom_call.1} parent=1 // pred_check
      _
    $region35: #{tpu_custom_call.1} parent=1 // pred_check_branch
      %93 = sbr.rel (0) target = $region37
    $region36: #{tpu_custom_call.1} parent=1 // pred_region
      %s95 = ssub.s32 512, 512
      %96 = vsyncadd [#allocation12], %s95
      %s97 = sshll.u32 [#allocation11], 4
      %s98 = int_to_ptr.vmem [resolvable:$true] %s97
      %103 = dma.hbm_to_vmem [thread:$0]  %s8, 512, %s98, [#allocation12], 64, 64, 4
    $region37: #{tpu_custom_call.1} parent=1 // pred_fallthru
      _
    // Predicated region
    $region38: #{tpu_custom_call.1} parent=1 // pred_check
      _
    $region39: #{tpu_custom_call.1} parent=1 // pred_check_branch
      %105 = sbr.rel (0) target = $region41
    $region40: #{tpu_custom_call.1} parent=1 // pred_region
      _
    $region41: #{tpu_custom_call.1} parent=1 // pred_fallthru
      _
    // Predicated region
    $region42: #{tpu_custom_call.1} parent=1 // pred_check
      _
    $region43: #{tpu_custom_call.1} parent=1 // pred_check_branch
      %107 = sbr.rel (0) target = $region45
    $region44: #{tpu_custom_call.1} parent=1 // pred_region
      _
    $region45: #{tpu_custom_call.1} parent=1 // pred_fallthru
      _
    // Predicated region
    $region46: #{tpu_custom_call.1} parent=1 // pred_check
      _
    $region47: #{tpu_custom_call.1} parent=1 // pred_check_branch
      %109 = sbr.rel (0) target = $region49
    $region48: #{tpu_custom_call.1} parent=1 // pred_region
      _
    $region49: #{tpu_custom_call.1} parent=1 // pred_fallthru
      _
    // Predicated region
    $region50: #{tpu_custom_call.1} parent=1 // pred_check
      _
    $region51: #{tpu_custom_call.1} parent=1 // pred_check_branch
      %111 = sbr.rel (0) target = $region53
    $region52: #{tpu_custom_call.1} parent=1 // pred_region
      %s113 = ssub.s32 512, 512
      %114 = vsyncadd [#allocation12], %s113
      %s115 = sshll.u32 [#allocation13], 4
      %s116 = int_to_ptr.vmem [resolvable:$true] %s115
      %121 = dma.hbm_to_vmem [thread:$0]  %s12, 512, %s116, [#allocation12], 64, 64, 4
    $region53: #{tpu_custom_call.1} parent=1 // pred_fallthru
      _
    // Predicated region
    $region54: #{tpu_custom_call.1} parent=1 // pred_check
      _
    $region55: #{tpu_custom_call.1} parent=1 // pred_check_branch
      %123 = sbr.rel (0) target = $region57
    $region56: #{tpu_custom_call.1} parent=1 // pred_region
      _
    $region57: #{tpu_custom_call.1} parent=1 // pred_fallthru
      _
    // Predicated region
    $region58: #{tpu_custom_call.1} parent=1 // pred_check
      _
    $region59: #{tpu_custom_call.1} parent=1 // pred_check_branch
      %125 = sbr.rel (0) target = $region61
    $region60: #{tpu_custom_call.1} parent=1 // pred_region
      %s127 = ssub.s32 512, 512
      %128 = vsyncadd [#allocation15], %s127
      %s129 = sshll.u32 [#allocation14], 4
      %s130 = int_to_ptr.vmem [resolvable:$true] %s129
      %135 = dma.hbm_to_vmem [thread:$0]  %s14, 512, %s130, [#allocation15], 64, 64, 4
    $region61: #{tpu_custom_call.1} parent=1 // pred_fallthru
      _
    // Predicated region
    $region62: #{tpu_custom_call.1} parent=1 // pred_check
      _
    $region63: #{tpu_custom_call.1} parent=1 // pred_check_branch
      %137 = sbr.rel (0) target = $region65
    $region64: #{tpu_custom_call.1} parent=1 // pred_region
      _
    $region65: #{tpu_custom_call.1} parent=1 // pred_fallthru
      _
    // Predicated region
    $region66: #{tpu_custom_call.1} parent=1 // pred_check
      _
    $region67: #{tpu_custom_call.1} parent=1 // pred_check_branch
      %139 = sbr.rel (0) target = $region69
    $region68: #{tpu_custom_call.1} parent=1 // pred_region
      %140 = dma.done [#allocation3], 128
    $region69: #{tpu_custom_call.1} parent=1 // pred_fallthru
      _
    // Predicated region
    $region70: #{tpu_custom_call.1} parent=1 // pred_check
      _
    $region71: #{tpu_custom_call.1} parent=1 // pred_check_branch
      %142 = sbr.rel (0) target = $region73
    $region72: #{tpu_custom_call.1} parent=1 // pred_region
      %143 = dma.done [#allocation6], 128
    $region73: #{tpu_custom_call.1} parent=1 // pred_fallthru
      _
    // Predicated region
    $region74: #{tpu_custom_call.1} parent=1 // pred_check
      _
    $region75: #{tpu_custom_call.1} parent=1 // pred_check_branch
      %145 = sbr.rel (0) target = $region77
    $region76: #{tpu_custom_call.1} parent=1 // pred_region
      %146 = dma.done [#allocation6], 256
    $region77: #{tpu_custom_call.1} parent=1 // pred_fallthru
      _
    // Predicated region
    $region78: #{tpu_custom_call.1} parent=1 // pred_check
      _
    $region79: #{tpu_custom_call.1} parent=1 // pred_check_branch
      %148 = sbr.rel (0) target = $region81
    $region80: #{tpu_custom_call.1} parent=1 // pred_region
      %149 = dma.done [#allocation9], 512
    $region81: #{tpu_custom_call.1} parent=1 // pred_fallthru
      _
    // Predicated region
    $region82: #{tpu_custom_call.1} parent=1 // pred_check
      _
    $region83: #{tpu_custom_call.1} parent=1 // pred_check_branch
      %151 = sbr.rel (0) target = $region85
    $region84: #{tpu_custom_call.1} parent=1 // pred_region
      %152 = dma.done [#allocation9], 512
    $region85: #{tpu_custom_call.1} parent=1 // pred_fallthru
      _
    // Predicated region
    $region86: #{tpu_custom_call.1} parent=1 // pred_check
      _
    $region87: #{tpu_custom_call.1} parent=1 // pred_check_branch
      %154 = sbr.rel (0) target = $region89
    $region88: #{tpu_custom_call.1} parent=1 // pred_region
      %155 = dma.done [#allocation12], 512
    $region89: #{tpu_custom_call.1} parent=1 // pred_fallthru
      _
    // Predicated region
    $region90: #{tpu_custom_call.1} parent=1 // pred_check
      _
    $region91: #{tpu_custom_call.1} parent=1 // pred_check_branch
      %157 = sbr.rel (0) target = $region93
    $region92: #{tpu_custom_call.1} parent=1 // pred_region
      %158 = dma.done [#allocation12], 512
    $region93: #{tpu_custom_call.1} parent=1 // pred_fallthru
      _
    // Predicated region
    $region94: #{tpu_custom_call.1} parent=1 // pred_check
      _
    $region95: #{tpu_custom_call.1} parent=1 // pred_check_branch
      %160 = sbr.rel (0) target = $region97
    $region96: #{tpu_custom_call.1} parent=1 // pred_region
      %161 = dma.done [#allocation15], 512
    $region97: #{tpu_custom_call.1} parent=1 // pred_fallthru
      _
    %v163 = vld [vmem:[#allocation2] sm:$0xff]
    %v164 = vpack.c.bf16 %v163, %v163
    %v165 = vld [vmem:[#allocation7] sm:$0xf]
    %v166 = vld [vmem:[#allocation7 + $0x4] sm:$0xf]
    %v167 = vld [vmem:[#allocation7 + $0x8] sm:$0xf]
    %v168 = vld [vmem:[#allocation7 + $0xc] sm:$0xf]
    %v169 = vld [vmem:[%s3] sm:$0x1]
    %v171 = vlaneseq
    %v172 = vshrl.u32 %v171, 7
    %v173 = vsub.s32 0, %v172
    %v174 = vrot.slane %v169, %v173
    %v180 = vunpack.c.l.b16 %v165
    %v181 = vunpack.c.l.b16 %v166
    %v182 = vunpack.c.l.b16 %v167
    %v183 = vunpack.c.l.b16 %v168
    %v184 = vpack.c.b16 %v181, %v180
    %v185 = vpack.c.b16 %v183, %v182
    %vm188 = vcmask 261120
    %v190 = vsel %vm188, %v164, 0
    %192 = vmatprep.subr.bf16.mxu0 0
    %193 = vmatpush1.bf16.msra.mxu0 0
    %194 = vmatprep.subr.bf16.mxu0 0
    %195 = vmatpush1.bf16.msra.mxu0 0
    %196 = vmatprep.subr.bf16.mxu0 0
    %197 = vmatpush1.bf16.msra.mxu0 0
    %198 = vmatprep.subr.bf16.mxu0 0
    %199 = vmatpush1.bf16.msra.mxu0 0
    %200 = vmatprep.subr.bf16.mxu0 0
    %201 = vmatpush1.bf16.msra.mxu0 0
    %202 = vmatprep.subr.bf16.mxu0 0
    %203 = vmatpush1.bf16.msra.mxu0 0
    %204 = vmatprep.subr.bf16.mxu0 0
    %205 = vmatpush1.bf16.msra.mxu0 %v185
    %206 = vmatprep.subr.bf16.mxu0 0
    %207 = vmatpush1.bf16.msra.mxu0 %v184
    %208 = vmatprep.subr.bf16.mxu0 0
    %209 = vmatpush2.bf16.msra.mxu0 0
    %210 = vmatprep.subr.bf16.mxu0 0
    %211 = vmatpush2.bf16.msra.mxu0 0
    %212 = vmatprep.subr.bf16.mxu0 0
    %213 = vmatpush2.bf16.msra.mxu0 0
    %214 = vmatprep.subr.bf16.mxu0 0
    %215 = vmatpush2.bf16.msra.mxu0 0
    %216 = vmatprep.subr.bf16.mxu0 0
    %217 = vmatpush2.bf16.msra.mxu0 0
    %218 = vmatprep.subr.bf16.mxu0 0
    %219 = vmatpush2.bf16.msra.mxu0 0
    %220 = vmatprep.subr.bf16.mxu0 0
    %221 = vmatpush2.bf16.msra.mxu0 0
    %222 = vmatprep.subr.bf16.mxu0 0
    %223 = vmatpush2.bf16.msra.mxu0 0
    %224 = vmatprep.mubr.bf16.mxu0 0
    %225 = vmatmul.mubr.bf16.gmra.mxu0 %v190
    %v226 = vpop.f32.mrf.mxu0
    %v227 = vadd.f32 %v174, %v226
    %v228 = vpop.f32.mrf.mxu0
    %v229 = vpop.f32.mrf.mxu0
    %v230 = vpop.f32.mrf.mxu0
    %231 = vdwg.mxu0
    %v232 = vmul.f32 %v227, %v227
    %v233 = vmul.f32 %v227, %v232
    %v234 = vmul.f32 %v233, 0.044715
    %v235 = vadd.f32 %v227, %v234
    %v236 = vmul.f32 %v235, 0.7978846
    %v237 = vtanh.pop %v236
    %v238 = vadd.f32 %v237, 1.0
    %v239 = vmul.f32 %v238, 0.5
    %v240 = vmul.f32 %v227, %v239
    %v241 = vpack.c.bf16 %v240, %v240
    %v242 = vld [vmem:[#allocation8] sm:$0xf]
    %v243 = vld [vmem:[#allocation8 + $0x4] sm:$0xf]
    %v244 = vld [vmem:[#allocation8 + $0x8] sm:$0xf]
    %v245 = vld [vmem:[#allocation8 + $0xc] sm:$0xf]
    %v246 = vld [vmem:[#allocation8 + $0x10] sm:$0xf]
    %v247 = vld [vmem:[#allocation8 + $0x14] sm:$0xf]
    %v248 = vld [vmem:[#allocation8 + $0x18] sm:$0xf]
    %v249 = vld [vmem:[#allocation8 + $0x1c] sm:$0xf]
    %v250 = vld [vmem:[%s5] sm:$0x1]
    %v252 = vlaneseq
    %v253 = vshrl.u32 %v252, 7
    %v254 = vsub.s32 0, %v253
    %v255 = vrot.slane %v250, %v254
    %v265 = vunpack.c.l.b16 %v242
    %v266 = vunpack.c.l.b16 %v243
    %v267 = vunpack.c.l.b16 %v244
    %v268 = vunpack.c.l.b16 %v245
    %v269 = vunpack.c.l.b16 %v246
    %v270 = vunpack.c.l.b16 %v247
    %v271 = vunpack.c.l.b16 %v248
    %v272 = vunpack.c.l.b16 %v249
    %v273 = vpack.c.b16 %v266, %v265
    %v274 = vpack.c.b16 %v268, %v267
    %v275 = vpack.c.b16 %v270, %v269
    %v276 = vpack.c.b16 %v272, %v271
    %vm281 = vcmask 523264
    %v283 = vsel %vm281, %v241, 0
    %285 = vmatprep.subr.bf16.mxu0 0
    %286 = vmatpush1.bf16.msra.mxu0 0
    %287 = vmatprep.subr.bf16.mxu0 0
    %288 = vmatpush1.bf16.msra.mxu0 0
    %289 = vmatprep.subr.bf16.mxu0 0
    %290 = vmatpush1.bf16.msra.mxu0 0
    %291 = vmatprep.subr.bf16.mxu0 0
    %292 = vmatpush1.bf16.msra.mxu0 0
    %293 = vmatprep.subr.bf16.mxu0 0
    %294 = vmatpush1.bf16.msra.mxu0 %v276
    %295 = vmatprep.subr.bf16.mxu0 0
    %296 = vmatpush1.bf16.msra.mxu0 %v275
    %297 = vmatprep.subr.bf16.mxu0 0
    %298 = vmatpush1.bf16.msra.mxu0 %v274
    %299 = vmatprep.subr.bf16.mxu0 0
    %300 = vmatpush1.bf16.msra.mxu0 %v273
    %301 = vmatprep.subr.bf16.mxu0 0
    %302 = vmatpush2.bf16.msra.mxu0 0
    %303 = vmatprep.subr.bf16.mxu0 0
    %304 = vmatpush2.bf16.msra.mxu0 0
    %305 = vmatprep.subr.bf16.mxu0 0
    %306 = vmatpush2.bf16.msra.mxu0 0
    %307 = vmatprep.subr.bf16.mxu0 0
    %308 = vmatpush2.bf16.msra.mxu0 0
    %309 = vmatprep.subr.bf16.mxu0 0
    %310 = vmatpush2.bf16.msra.mxu0 0
    %311 = vmatprep.subr.bf16.mxu0 0
    %312 = vmatpush2.bf16.msra.mxu0 0
    %313 = vmatprep.subr.bf16.mxu0 0
    %314 = vmatpush2.bf16.msra.mxu0 0
    %315 = vmatprep.subr.bf16.mxu0 0
    %316 = vmatpush2.bf16.msra.mxu0 0
    %317 = vmatprep.mubr.bf16.mxu0 0
    %318 = vmatmul.mubr.bf16.gmra.mxu0 %v283
    %v319 = vpop.f32.mrf.mxu0
    %v320 = vadd.f32 %v255, %v319
    %v321 = vpop.f32.mrf.mxu0
    %v322 = vpop.f32.mrf.mxu0
    %v323 = vpop.f32.mrf.mxu0
    %324 = vdwg.mxu0
    %v325 = vmul.f32 %v320, %v320
    %v326 = vmul.f32 %v320, %v325
    %v327 = vmul.f32 %v326, 0.044715
    %v328 = vadd.f32 %v320, %v327
    %v329 = vmul.f32 %v328, 0.7978846
    %v330 = vtanh.pop %v329
    %v331 = vadd.f32 %v330, 1.0
    %v332 = vmul.f32 %v331, 0.5
    %v333 = vmul.f32 %v320, %v332
    %v334 = vpack.c.bf16 %v333, %v333
    %v335 = vld [vmem:[#allocation10] sm:$0xf]
    %v336 = vld [vmem:[#allocation10 + $0x4] sm:$0xf]
    %v337 = vld [vmem:[#allocation10 + $0x8] sm:$0xf]
    %v338 = vld [vmem:[#allocation10 + $0xc] sm:$0xf]
    %v339 = vld [vmem:[#allocation10 + $0x10] sm:$0xf]
    %v340 = vld [vmem:[#allocation10 + $0x14] sm:$0xf]
    %v341 = vld [vmem:[#allocation10 + $0x18] sm:$0xf]
    %v342 = vld [vmem:[#allocation10 + $0x1c] sm:$0xf]
    %v343 = vld [vmem:[%s7] sm:$0x1]
    %v345 = vlaneseq
    %v346 = vshrl.u32 %v345, 7
    %v347 = vsub.s32 0, %v346
    %v348 = vrot.slane %v343, %v347
    %v358 = vunpack.c.l.b16 %v335
    %v359 = vunpack.c.l.b16 %v336
    %v360 = vunpack.c.l.b16 %v337
    %v361 = vunpack.c.l.b16 %v338
    %v362 = vunpack.c.l.b16 %v339
    %v363 = vunpack.c.l.b16 %v340
    %v364 = vunpack.c.l.b16 %v341
    %v365 = vunpack.c.l.b16 %v342
    %v366 = vpack.c.b16 %v359, %v358
    %v367 = vpack.c.b16 %v361, %v360
    %v368 = vpack.c.b16 %v363, %v362
    %v369 = vpack.c.b16 %v365, %v364
    %v375 = vsel %vm281, %v334, 0
    %377 = vmatprep.subr.bf16.mxu0 0
    %378 = vmatpush1.bf16.msra.mxu0 0
    %379 = vmatprep.subr.bf16.mxu0 0
    %380 = vmatpush1.bf16.msra.mxu0 0
    %381 = vmatprep.subr.bf16.mxu0 0
    %382 = vmatpush1.bf16.msra.mxu0 0
    %383 = vmatprep.subr.bf16.mxu0 0
    %384 = vmatpush1.bf16.msra.mxu0 0
    %385 = vmatprep.subr.bf16.mxu0 0
    %386 = vmatpush1.bf16.msra.mxu0 %v369
    %387 = vmatprep.subr.bf16.mxu0 0
    %388 = vmatpush1.bf16.msra.mxu0 %v368
    %389 = vmatprep.subr.bf16.mxu0 0
    %390 = vmatpush1.bf16.msra.mxu0 %v367
    %391 = vmatprep.subr.bf16.mxu0 0
    %392 = vmatpush1.bf16.msra.mxu0 %v366
    %393 = vmatprep.subr.bf16.mxu0 0
    %394 = vmatpush2.bf16.msra.mxu0 0
    %395 = vmatprep.subr.bf16.mxu0 0
    %396 = vmatpush2.bf16.msra.mxu0 0
    %397 = vmatprep.subr.bf16.mxu0 0
    %398 = vmatpush2.bf16.msra.mxu0 0
    %399 = vmatprep.subr.bf16.mxu0 0
    %400 = vmatpush2.bf16.msra.mxu0 0
    %401 = vmatprep.subr.bf16.mxu0 0
    %402 = vmatpush2.bf16.msra.mxu0 0
    %403 = vmatprep.subr.bf16.mxu0 0
    %404 = vmatpush2.bf16.msra.mxu0 0
    %405 = vmatprep.subr.bf16.mxu0 0
    %406 = vmatpush2.bf16.msra.mxu0 0
    %407 = vmatprep.subr.bf16.mxu0 0
    %408 = vmatpush2.bf16.msra.mxu0 0
    %409 = vmatprep.mubr.bf16.mxu0 0
    %410 = vmatmul.mubr.bf16.gmra.mxu0 %v375
    %v411 = vpop.f32.mrf.mxu0
    %v412 = vadd.f32 %v348, %v411
    %v413 = vpop.f32.mrf.mxu0
    %v414 = vpop.f32.mrf.mxu0
    %v415 = vpop.f32.mrf.mxu0
    %416 = vdwg.mxu0
    %v417 = vmul.f32 %v412, %v412
    %v418 = vmul.f32 %v412, %v417
    %v419 = vmul.f32 %v418, 0.044715
    %v420 = vadd.f32 %v412, %v419
    %v421 = vmul.f32 %v420, 0.7978846
    %v422 = vtanh.pop %v421
    %v423 = vadd.f32 %v422, 1.0
    %v424 = vmul.f32 %v423, 0.5
    %v425 = vmul.f32 %v412, %v424
    %v426 = vpack.c.bf16 %v425, %v425
    %v427 = vld [vmem:[#allocation11] sm:$0xf]
    %v428 = vld [vmem:[#allocation11 + $0x4] sm:$0xf]
    %v429 = vld [vmem:[#allocation11 + $0x8] sm:$0xf]
    %v430 = vld [vmem:[#allocation11 + $0xc] sm:$0xf]
    %v431 = vld [vmem:[#allocation11 + $0x10] sm:$0xf]
    %v432 = vld [vmem:[#allocation11 + $0x14] sm:$0xf]
    %v433 = vld [vmem:[#allocation11 + $0x18] sm:$0xf]
    %v434 = vld [vmem:[#allocation11 + $0x1c] sm:$0xf]
    %v435 = vld [vmem:[%s9] sm:$0x1]
    %v437 = vlaneseq
    %v438 = vshrl.u32 %v437, 7
    %v439 = vsub.s32 0, %v438
    %v440 = vrot.slane %v435, %v439
    %v450 = vunpack.c.l.b16 %v427
    %v451 = vunpack.c.l.b16 %v428
    %v452 = vunpack.c.l.b16 %v429
    %v453 = vunpack.c.l.b16 %v430
    %v454 = vunpack.c.l.b16 %v431
    %v455 = vunpack.c.l.b16 %v432
    %v456 = vunpack.c.l.b16 %v433
    %v457 = vunpack.c.l.b16 %v434
    %v458 = vpack.c.b16 %v451, %v450
    %v459 = vpack.c.b16 %v453, %v452
    %v460 = vpack.c.b16 %v455, %v454
    %v461 = vpack.c.b16 %v457, %v456
    %v467 = vsel %vm281, %v426, 0
    %469 = vmatprep.subr.bf16.mxu0 0
    %470 = vmatpush1.bf16.msra.mxu0 0
    %471 = vmatprep.subr.bf16.mxu0 0
    %472 = vmatpush1.bf16.msra.mxu0 0
    %473 = vmatprep.subr.bf16.mxu0 0
    %474 = vmatpush1.bf16.msra.mxu0 0
    %475 = vmatprep.subr.bf16.mxu0 0
    %476 = vmatpush1.bf16.msra.mxu0 0
    %477 = vmatprep.subr.bf16.mxu0 0
    %478 = vmatpush1.bf16.msra.mxu0 %v461
    %479 = vmatprep.subr.bf16.mxu0 0
    %480 = vmatpush1.bf16.msra.mxu0 %v460
    %481 = vmatprep.subr.bf16.mxu0 0
    %482 = vmatpush1.bf16.msra.mxu0 %v459
    %483 = vmatprep.subr.bf16.mxu0 0
    %484 = vmatpush1.bf16.msra.mxu0 %v458
    %485 = vmatprep.subr.bf16.mxu0 0
    %486 = vmatpush2.bf16.msra.mxu0 0
    %487 = vmatprep.subr.bf16.mxu0 0
    %488 = vmatpush2.bf16.msra.mxu0 0
    %489 = vmatprep.subr.bf16.mxu0 0
    %490 = vmatpush2.bf16.msra.mxu0 0
    %491 = vmatprep.subr.bf16.mxu0 0
    %492 = vmatpush2.bf16.msra.mxu0 0
    %493 = vmatprep.subr.bf16.mxu0 0
    %494 = vmatpush2.bf16.msra.mxu0 0
    %495 = vmatprep.subr.bf16.mxu0 0
    %496 = vmatpush2.bf16.msra.mxu0 0
    %497 = vmatprep.subr.bf16.mxu0 0
    %498 = vmatpush2.bf16.msra.mxu0 0
    %499 = vmatprep.subr.bf16.mxu0 0
    %500 = vmatpush2.bf16.msra.mxu0 0
    %501 = vmatprep.mubr.bf16.mxu0 0
    %502 = vmatmul.mubr.bf16.gmra.mxu0 %v467
    %v503 = vpop.f32.mrf.mxu0
    %v504 = vadd.f32 %v440, %v503
    %v505 = vpop.f32.mrf.mxu0
    %v506 = vpop.f32.mrf.mxu0
    %v507 = vpop.f32.mrf.mxu0
    %508 = vdwg.mxu0
    %509 = vst [vmem:[#allocation16] sm:$0xff] %v504
    %v510 = vmul.f32 %v504, 0.5
    %v511 = vmul.f32 %v510, 1.442695
    %v512 = vpow.pop %v511
    %v513 = vld [vmem:[#allocation5] sm:$0xff]
    %515 = vrot.lane.b32.xlu0 %v513, 16
    %v516 = vpop.permute.xlu0 %515
    %v518 = vmul.f32 %v512, %v516
    %520 = vrot.lane.b32.xlu0 %v518, 112
    %v521 = vpop.permute.xlu0 %520
    %v523 = vadd.f32 %v504, %v521
    %v524 = vpack.c.bf16 %v523, %v523
    %v525 = vld [vmem:[%s10] sm:$0xf]
    %v526 = vld [vmem:[%s10 + $0x4] sm:$0xf]
    %v527 = vld [vmem:[%s11] sm:$0x1]
    %v529 = vlaneseq
    %v530 = vshrl.u32 %v529, 7
    %v531 = vsub.s32 0, %v530
    %v532 = vrot.slane %v527, %v531
    %v536 = vunpack.c.l.b16 %v525
    %v537 = vunpack.c.l.b16 %v526
    %v538 = vpack.c.b16 %v537, %v536
    %vm540 = vcmask 130048
    %v542 = vsel %vm540, %v524, 0
    %544 = vmatprep.subr.bf16.mxu0 0
    %545 = vmatpush1.bf16.msra.mxu0 0
    %546 = vmatprep.subr.bf16.mxu0 0
    %547 = vmatpush1.bf16.msra.mxu0 0
    %548 = vmatprep.subr.bf16.mxu0 0
    %549 = vmatpush1.bf16.msra.mxu0 0
    %550 = vmatprep.subr.bf16.mxu0 0
    %551 = vmatpush1.bf16.msra.mxu0 0
    %552 = vmatprep.subr.bf16.mxu0 0
    %553 = vmatpush1.bf16.msra.mxu0 0
    %554 = vmatprep.subr.bf16.mxu0 0
    %555 = vmatpush1.bf16.msra.mxu0 0
    %556 = vmatprep.subr.bf16.mxu0 0
    %557 = vmatpush1.bf16.msra.mxu0 0
    %558 = vmatprep.subr.bf16.mxu0 0
    %559 = vmatpush1.bf16.msra.mxu0 %v538
    %560 = vmatprep.subr.bf16.mxu0 0
    %561 = vmatpush2.bf16.msra.mxu0 0
    %562 = vmatprep.subr.bf16.mxu0 0
    %563 = vmatpush2.bf16.msra.mxu0 0
    %564 = vmatprep.subr.bf16.mxu0 0
    %565 = vmatpush2.bf16.msra.mxu0 0
    %566 = vmatprep.subr.bf16.mxu0 0
    %567 = vmatpush2.bf16.msra.mxu0 0
    %568 = vmatprep.subr.bf16.mxu0 0
    %569 = vmatpush2.bf16.msra.mxu0 0
    %570 = vmatprep.subr.bf16.mxu0 0
    %571 = vmatpush2.bf16.msra.mxu0 0
    %572 = vmatprep.subr.bf16.mxu0 0
    %573 = vmatpush2.bf16.msra.mxu0 0
    %574 = vmatprep.subr.bf16.mxu0 0
    %575 = vmatpush2.bf16.msra.mxu0 0
    %576 = vmatprep.mubr.bf16.mxu0 0
    %577 = vmatmul.mubr.bf16.gmra.mxu0 %v542
    %v578 = vpop.f32.mrf.mxu0
    %v579 = vadd.f32 %v532, %v578
    %v580 = vpop.f32.mrf.mxu0
    %v581 = vpop.f32.mrf.mxu0
    %v582 = vpop.f32.mrf.mxu0
    %583 = vdwg.mxu0
    %v584 = vmul.f32 %v579, %v579
    %v585 = vmul.f32 %v579, %v584
    %v586 = vmul.f32 %v585, 0.044715
    %v587 = vadd.f32 %v579, %v586
    %v588 = vmul.f32 %v587, 0.7978846
    %v589 = vtanh.pop %v588
    %v590 = vadd.f32 %v589, 1.0
    %v591 = vmul.f32 %v590, 0.5
    %v592 = vmul.f32 %v579, %v591
    %v593 = vpack.c.bf16 %v592, %v592
    %v594 = vld [vmem:[#allocation13] sm:$0xf]
    %v595 = vld [vmem:[#allocation13 + $0x4] sm:$0xf]
    %v596 = vld [vmem:[#allocation13 + $0x8] sm:$0xf]
    %v597 = vld [vmem:[#allocation13 + $0xc] sm:$0xf]
    %v598 = vld [vmem:[#allocation13 + $0x10] sm:$0xf]
    %v599 = vld [vmem:[#allocation13 + $0x14] sm:$0xf]
    %v600 = vld [vmem:[#allocation13 + $0x18] sm:$0xf]
    %v601 = vld [vmem:[#allocation13 + $0x1c] sm:$0xf]
    %v602 = vld [vmem:[%s13] sm:$0x1]
    %v604 = vlaneseq
    %v605 = vshrl.u32 %v604, 7
    %v606 = vsub.s32 0, %v605
    %v607 = vrot.slane %v602, %v606
    %v617 = vunpack.c.l.b16 %v594
    %v618 = vunpack.c.l.b16 %v595
    %v619 = vunpack.c.l.b16 %v596
    %v620 = vunpack.c.l.b16 %v597
    %v621 = vunpack.c.l.b16 %v598
    %v622 = vunpack.c.l.b16 %v599
    %v623 = vunpack.c.l.b16 %v600
    %v624 = vunpack.c.l.b16 %v601
    %v625 = vpack.c.b16 %v618, %v617
    %v626 = vpack.c.b16 %v620, %v619
    %v627 = vpack.c.b16 %v622, %v621
    %v628 = vpack.c.b16 %v624, %v623
    %v634 = vsel %vm281, %v593, 0
    %636 = vmatprep.subr.bf16.mxu0 0
    %637 = vmatpush1.bf16.msra.mxu0 0
    %638 = vmatprep.subr.bf16.mxu0 0
    %639 = vmatpush1.bf16.msra.mxu0 0
    %640 = vmatprep.subr.bf16.mxu0 0
    %641 = vmatpush1.bf16.msra.mxu0 0
    %642 = vmatprep.subr.bf16.mxu0 0
    %643 = vmatpush1.bf16.msra.mxu0 0
    %644 = vmatprep.subr.bf16.mxu0 0
    %645 = vmatpush1.bf16.msra.mxu0 %v628
    %646 = vmatprep.subr.bf16.mxu0 0
    %647 = vmatpush1.bf16.msra.mxu0 %v627
    %648 = vmatprep.subr.bf16.mxu0 0
    %649 = vmatpush1.bf16.msra.mxu0 %v626
    %650 = vmatprep.subr.bf16.mxu0 0
    %651 = vmatpush1.bf16.msra.mxu0 %v625
    %652 = vmatprep.subr.bf16.mxu0 0
    %653 = vmatpush2.bf16.msra.mxu0 0
    %654 = vmatprep.subr.bf16.mxu0 0
    %655 = vmatpush2.bf16.msra.mxu0 0
    %656 = vmatprep.subr.bf16.mxu0 0
    %657 = vmatpush2.bf16.msra.mxu0 0
    %658 = vmatprep.subr.bf16.mxu0 0
    %659 = vmatpush2.bf16.msra.mxu0 0
    %660 = vmatprep.subr.bf16.mxu0 0
    %661 = vmatpush2.bf16.msra.mxu0 0
    %662 = vmatprep.subr.bf16.mxu0 0
    %663 = vmatpush2.bf16.msra.mxu0 0
    %664 = vmatprep.subr.bf16.mxu0 0
    %665 = vmatpush2.bf16.msra.mxu0 0
    %666 = vmatprep.subr.bf16.mxu0 0
    %667 = vmatpush2.bf16.msra.mxu0 0
    %668 = vmatprep.mubr.bf16.mxu0 0
    %669 = vmatmul.mubr.bf16.gmra.mxu0 %v634
    %v670 = vpop.f32.mrf.mxu0
    %v671 = vadd.f32 %v607, %v670
    %v672 = vpop.f32.mrf.mxu0
    %v673 = vpop.f32.mrf.mxu0
    %v674 = vpop.f32.mrf.mxu0
    %675 = vdwg.mxu0
    %v676 = vmul.f32 %v671, %v671
    %v677 = vmul.f32 %v671, %v676
    %v678 = vmul.f32 %v677, 0.044715
    %v679 = vadd.f32 %v671, %v678
    %v680 = vmul.f32 %v679, 0.7978846
    %v681 = vtanh.pop %v680
    %v682 = vadd.f32 %v681, 1.0
    %v683 = vmul.f32 %v682, 0.5
    %v684 = vmul.f32 %v671, %v683
    %v685 = vpack.c.bf16 %v684, %v684
    %v686 = vld [vmem:[#allocation14] sm:$0xf]
    %v687 = vld [vmem:[#allocation14 + $0x4] sm:$0xf]
    %v688 = vld [vmem:[#allocation14 + $0x8] sm:$0xf]
    %v689 = vld [vmem:[#allocation14 + $0xc] sm:$0xf]
    %v690 = vld [vmem:[#allocation14 + $0x10] sm:$0xf]
    %v691 = vld [vmem:[#allocation14 + $0x14] sm:$0xf]
    %v692 = vld [vmem:[#allocation14 + $0x18] sm:$0xf]
    %v693 = vld [vmem:[#allocation14 + $0x1c] sm:$0xf]
    %v694 = vld [vmem:[%s15] sm:$0x1]
    %v696 = vlaneseq
    %v697 = vshrl.u32 %v696, 7
    %v698 = vsub.s32 0, %v697
    %v699 = vrot.slane %v694, %v698
    %v709 = vunpack.c.l.b16 %v686
    %v710 = vunpack.c.l.b16 %v687
    %v711 = vunpack.c.l.b16 %v688
    %v712 = vunpack.c.l.b16 %v689
    %v713 = vunpack.c.l.b16 %v690
    %v714 = vunpack.c.l.b16 %v691
    %v715 = vunpack.c.l.b16 %v692
    %v716 = vunpack.c.l.b16 %v693
    %v717 = vpack.c.b16 %v710, %v709
    %v718 = vpack.c.b16 %v712, %v711
    %v719 = vpack.c.b16 %v714, %v713
    %v720 = vpack.c.b16 %v716, %v715
    %v726 = vsel %vm281, %v685, 0
    %728 = vmatprep.subr.bf16.mxu0 0
    %729 = vmatpush1.bf16.msra.mxu0 0
    %730 = vmatprep.subr.bf16.mxu0 0
    %731 = vmatpush1.bf16.msra.mxu0 0
    %732 = vmatprep.subr.bf16.mxu0 0
    %733 = vmatpush1.bf16.msra.mxu0 0
    %734 = vmatprep.subr.bf16.mxu0 0
    %735 = vmatpush1.bf16.msra.mxu0 0
    %736 = vmatprep.subr.bf16.mxu0 0
    %737 = vmatpush1.bf16.msra.mxu0 %v720
    %738 = vmatprep.subr.bf16.mxu0 0
    %739 = vmatpush1.bf16.msra.mxu0 %v719
    %740 = vmatprep.subr.bf16.mxu0 0
    %741 = vmatpush1.bf16.msra.mxu0 %v718
    %742 = vmatprep.subr.bf16.mxu0 0
    %743 = vmatpush1.bf16.msra.mxu0 %v717
    %744 = vmatprep.subr.bf16.mxu0 0
    %745 = vmatpush2.bf16.msra.mxu0 0
    %746 = vmatprep.subr.bf16.mxu0 0
    %747 = vmatpush2.bf16.msra.mxu0 0
    %748 = vmatprep.subr.bf16.mxu0 0
    %749 = vmatpush2.bf16.msra.mxu0 0
    %750 = vmatprep.subr.bf16.mxu0 0
    %751 = vmatpush2.bf16.msra.mxu0 0
    %752 = vmatprep.subr.bf16.mxu0 0
    %753 = vmatpush2.bf16.msra.mxu0 0
    %754 = vmatprep.subr.bf16.mxu0 0
    %755 = vmatpush2.bf16.msra.mxu0 0
    %756 = vmatprep.subr.bf16.mxu0 0
    %757 = vmatpush2.bf16.msra.mxu0 0
    %758 = vmatprep.subr.bf16.mxu0 0
    %759 = vmatpush2.bf16.msra.mxu0 0
    %760 = vmatprep.mubr.bf16.mxu0 0
    %761 = vmatmul.mubr.bf16.gmra.mxu0 %v726
    %v762 = vpop.f32.mrf.mxu0
    %v763 = vadd.f32 %v699, %v762
    %v764 = vpop.f32.mrf.mxu0
    %v765 = vpop.f32.mrf.mxu0
    %v766 = vpop.f32.mrf.mxu0
    %767 = vdwg.mxu0
    %768 = vst [vmem:[#allocation17] sm:$0xff] %v763
    // Predicated region
    $region98: #{tpu_custom_call.1} parent=1 // pred_check
      _
    $region99: #{tpu_custom_call.1} parent=1 // pred_check_branch
      %770 = sbr.rel (0) target = $region101
    $region100: #{tpu_custom_call.1} parent=1 // pred_region
      %s772 = ssub.s32 128, 128
      %773 = vsyncadd [#allocation4], %s772
      %s775 = sshll.u32 [#allocation16], 4
      %s776 = int_to_ptr.vmem [resolvable:$true] %s775
      %778 = dma.vmem_to_hbm [thread:$0]  %s776, 128, %s16, [#allocation4]
    $region101: #{tpu_custom_call.1} parent=1 // pred_fallthru
      _
    // Predicated region
    $region102: #{tpu_custom_call.1} parent=1 // pred_check
      _
    $region103: #{tpu_custom_call.1} parent=1 // pred_check_branch
      %780 = sbr.rel (0) target = $region105
    $region104: #{tpu_custom_call.1} parent=1 // pred_region
      %s782 = ssub.s32 128, 128
      %783 = vsyncadd [#allocation18], %s782
      %s785 = sshll.u32 [#allocation17], 4
      %s786 = int_to_ptr.vmem [resolvable:$true] %s785
      %788 = dma.vmem_to_hbm [thread:$0]  %s786, 128, %s17, [#allocation18]
    $region105: #{tpu_custom_call.1} parent=1 // pred_fallthru
      _
    // Predicated region
    $region106: #{tpu_custom_call.1} parent=1 // pred_check
      _
    $region107: #{tpu_custom_call.1} parent=1 // pred_check_branch
      %790 = sbr.rel (0) target = $region109
    $region108: #{tpu_custom_call.1} parent=1 // pred_region
      %791 = dma.done [#allocation4], 128
    $region109: #{tpu_custom_call.1} parent=1 // pred_fallthru
      _
    // Predicated region
    $region110: #{tpu_custom_call.1} parent=1 // pred_check
      _
    $region111: #{tpu_custom_call.1} parent=1 // pred_check_branch
      %793 = sbr.rel (0) target = $region113
    $region112: #{tpu_custom_call.1} parent=1 // pred_region
      %794 = dma.done [#allocation18], 128
    $region113: #{tpu_custom_call.1} parent=1 // pred_fallthru
      _
    %795 = vsyncpa [#allocation3], 1
    %796 = vsyncpa [#allocation6], 1
    %797 = vsyncpa [#allocation9], 1
    %798 = vsyncpa [#allocation12], 1
    %799 = vsyncpa [#allocation15], 1
    %800 = vsyncpa [#allocation4], 1
    %801 = vsyncpa [#allocation18], 1

</llo_original>
